<compile_context>
chip_gen: v6e
topology: v6e:2x2x1
jax: 0.10.0
libtpu: 0.0.40
codegen_flags: <defaults>
</compile_context>

<pallas_src>
import jax
import jax.numpy as jnp
from jax.experimental import pallas as pl
from jax.experimental.pallas import tpu as pltpu


def _round_up(v, m):
    return (v + m - 1) // m * m


# --------------------------------------------------------------------------
# Kernel
# --------------------------------------------------------------------------
def smallnn_kernel(x_ref,
                   w1_ref, b1_ref,
                   w2_ref, b2_ref,
                   w3_ref, b3_ref,
                   o_ref):
    # x_ref: (Fp, block_b) feature-major, batch tile on the lane axis.
    # Each layer is W @ h on the MXU with f32 accumulation; ReLU on the VPU;
    # sigmoid (exp + recip) on the EUP.  Only the single real output row is
    # activated and stored -> lane-dense (1, block_b) write.
    x = x_ref[...]
    h = jnp.dot(w1_ref[...], x, preferred_element_type=jnp.float32) + b1_ref[...]
    h = jnp.maximum(h, 0.0)
    h = jnp.dot(w2_ref[...], h.astype(w2_ref.dtype),
                preferred_element_type=jnp.float32) + b2_ref[...]
    h = jnp.maximum(h, 0.0)
    z = jnp.dot(w3_ref[...], h.astype(w3_ref.dtype),
                preferred_element_type=jnp.float32) + b3_ref[...]
    o_ref[...] = jax.nn.sigmoid(z[0:1, :])


# --------------------------------------------------------------------------
# One-time parameter preparation (hoisted out of the hot path)
# --------------------------------------------------------------------------
def prepare_params(params, dtype=jnp.bfloat16):
    """Pad weights/biases once to sublane-aligned (multiple-of-8) out dims and
    cast weights to `dtype` (bf16 by default).  Padding rows/cols are zero and
    numerically inert through the ReLU chain."""
    (w1, b1), (w2, b2), (w3, b3) = params
    H1, F = w1.shape
    H2, OUT = w2.shape[0], w3.shape[0]
    Fp, H1p, H2p, OUTp = (_round_up(F, 8), _round_up(H1, 8),
                          _round_up(H2, 8), _round_up(OUT, 8))
    w1p = jnp.zeros((H1p, Fp), dtype).at[:H1, :F].set(w1.astype(dtype))
    b1p = jnp.zeros((H1p, 1), jnp.float32).at[:H1, 0].set(b1)
    w2p = jnp.zeros((H2p, H1p), dtype).at[:H2, :H1].set(w2.astype(dtype))
    b2p = jnp.zeros((H2p, 1), jnp.float32).at[:H2, 0].set(b2)
    w3p = jnp.zeros((OUTp, H2p), dtype).at[:OUT, :H2].set(w3.astype(dtype))
    b3p = jnp.zeros((OUTp, 1), jnp.float32).at[:OUT, 0].set(b3)
    return (w1p, b1p, w2p, b2p, w3p, b3p)


# --------------------------------------------------------------------------
# Chip-aware tiling / VMEM limit
# --------------------------------------------------------------------------
def _choose_tiling(B, Fp, itemsize, device_kind=None):
    if device_kind is None:
        try:
            device_kind = (jax.devices()[0].device_kind or "").lower()
        except Exception:
            device_kind = ""
    num_tc = 2 if "v7" in device_kind else 1                      # v7x: 2 TCs/chip
    lane_mult = 256 if ("v6" in device_kind or "v7" in device_kind) else 128
    # Cap the batch tile so a double-buffered x tile stays ~8 MiB total.
    max_tile_bytes = 4 << 20
    cap = max(lane_mult,
              (max_tile_bytes // max(1, itemsize * Fp)) // lane_mult * lane_mult)
    per_core = -(-B // num_tc)                                    # even TC split
    block_b = min(cap, max(lane_mult, _round_up(per_core, lane_mult)))
    n_steps = -(-B // block_b)
    # Only force / round to a multiple of the TC count on multi-TC chips.
    n_steps = _round_up(max(n_steps, num_tc), num_tc)
    return block_b, n_steps


def _vmem_limit_bytes(prepared, Fp, block_b, itemsize):
    w1p, _, w2p, _, w3p, _ = prepared
    H1p, H2p, OUTp = w1p.shape[0], w2p.shape[0], w3p.shape[0]
    x_tile = Fp * block_b * itemsize
    o_tile = block_b * 4
    w_bytes = (H1p * Fp + H2p * H1p + OUTp * H2p) * itemsize
    b_bytes = (H1p + H2p + OUTp) * 4
    need = 2 * (x_tile + o_tile + w_bytes + b_bytes)              # double-buffered
    # Generous headroom for compiler scratch, still well under v7x's 64 MiB.
    return int(min(max(2 * need, 16 << 20), 48 << 20))


# --------------------------------------------------------------------------
# Forward
# --------------------------------------------------------------------------
def _smallnn_pallas(x_fm, prepared, block_b, n_steps, vmem_limit):
    w1p, b1p, w2p, b2p, w3p, b3p = prepared
    Fp, B_pad = x_fm.shape
    H1p, H2p, OUTp = w1p.shape[0], w2p.shape[0], w3p.shape[0]

    xmap = lambda i: (0, i)        # batch tiles march along the lane axis
    pmap = lambda i: (0, 0)        # parameters replicated / resident

    return pl.pallas_call(
        smallnn_kernel,
        out_shape=jax.ShapeDtypeStruct((1, B_pad), jnp.float32),
        grid=(n_steps,),
        in_specs=[
            pl.BlockSpec((Fp, block_b), xmap),
            pl.BlockSpec((H1p, Fp), pmap), pl.BlockSpec((H1p, 1), pmap),
            pl.BlockSpec((H2p, H1p), pmap), pl.BlockSpec((H2p, 1), pmap),
            pl.BlockSpec((OUTp, H2p), pmap), pl.BlockSpec((OUTp, 1), pmap),
        ],
        out_specs=pl.BlockSpec((1, block_b), xmap),
        compiler_params=pltpu.CompilerParams(
            dimension_semantics=("parallel",),
            vmem_limit_bytes=vmem_limit,
        ),
    )(x_fm, w1p, b1p, w2p, b2p, w3p, b3p)


def smallnn_forward(x, prepared, *, block_b=None, n_steps=None):
    """Fused SmallNN forward.

    x:        (B, input_size) float32, batch-major (like the PyTorch module).
    prepared: output of prepare_params() (pad/cast done once at init).
    returns   (B, 1) float32.
    """
    w1p = prepared[0]
    B, F = x.shape
    Fp = w1p.shape[1]
    dtype = w1p.dtype
    itemsize = jnp.dtype(dtype).itemsize
    if block_b is None or n_steps is None:
        block_b, n_steps = _choose_tiling(B, Fp, itemsize)
    B_pad = block_b * n_steps

    # Per-call prep: transpose + zero-pad x to feature-major (Fp, B_pad).
    # For repeated calls at a fixed batch shape, hoist/cache this array and
    # call _smallnn_pallas directly so the kernel is the only per-call work.
    x_fm = jnp.zeros((Fp, B_pad), dtype).at[:F, :B].set(x.T.astype(dtype))

    vmem_limit = _vmem_limit_bytes(prepared, Fp, block_b, itemsize)
    out = _smallnn_pallas(x_fm, prepared, block_b, n_steps, vmem_limit)
    return out[:, :B].T            # strip batch padding; (B, 1) like the module


# --------------------------------------------------------------------------
# Init + reference
# --------------------------------------------------------------------------
def init_params(key, input_size):
    """PyTorch nn.Linear default init: U[-1/sqrt(fan_in), +1/sqrt(fan_in)].
    Weights kept in PyTorch (out, in) order, biases (out,)."""
    dims = [(input_size, 20), (20, 30), (30, 1)]
    params = []
    for fan_in, fan_out in dims:
        key, kw, kb = jax.random.split(key, 3)
        bound = 1.0 / jnp.sqrt(jnp.float32(fan_in))
        w = jax.random.uniform(kw, (fan_out, fan_in), jnp.float32, -bound, bound)
        b = jax.random.uniform(kb, (fan_out,), jnp.float32, -bound, bound)
        params.append((w, b))
    return params


def reference_forward(x, params):
    (w1, b1), (w2, b2), (w3, b3) = params
    h = jnp.maximum(x @ w1.T + b1, 0.0)
    h = jnp.maximum(h @ w2.T + b2, 0.0)
    return jax.nn.sigmoid(h @ w3.T + b3)


if __name__ == "__main__":
    key = jax.random.PRNGKey(0)
    input_size = 16
    batch = 8

    kx, kp = jax.random.split(key)
    x = jax.random.normal(kx, (batch, input_size), jnp.float32)
    params = init_params(kp, input_size)
    ref = reference_forward(x, params)

    # Default perf path: bf16 MXU operands, f32 accumulation.
    prepared_bf16 = prepare_params(params, jnp.bfloat16)
    out = jax.block_until_ready(smallnn_forward(x, prepared_bf16))
    assert out.shape == (batch, 1)
    assert jnp.allclose(out, ref, atol=3e-2, rtol=0.0), "bf16 kernel mismatch vs reference"

    # f32 validation path: exact check of kernel semantics.
    prepared_f32 = prepare_params(params, jnp.float32)
    out_f32 = jax.block_until_ready(smallnn_forward(x, prepared_f32))
    assert out_f32.shape == (batch, 1)
    assert jnp.allclose(out_f32, ref, atol=1e-5, rtol=1e-5), "f32 kernel mismatch vs reference"

    print("KERNEL_OK")
</pallas_src>

<mosaic_0001>
module attributes {stable_mosaic.version = 11 : i64} {
  func.func @smallnn_kernel(%arg0: i32, %arg1: memref<16x128xbf16, #tpu.memory_space<vmem>>, %arg2: memref<24x16xbf16, #tpu.memory_space<vmem>>, %arg3: memref<24x1xf32, #tpu.memory_space<vmem>>, %arg4: memref<32x24xbf16, #tpu.memory_space<vmem>>, %arg5: memref<32x1xf32, #tpu.memory_space<vmem>>, %arg6: memref<8x32xbf16, #tpu.memory_space<vmem>>, %arg7: memref<8x1xf32, #tpu.memory_space<vmem>>, %arg8: memref<1x128xf32, #tpu.memory_space<vmem>>) attributes {dimension_semantics = [#tpu.dimension_semantics<parallel>], iteration_bounds = array<i64: 1>, scalar_prefetch = 0 : i64, scratch_operands = 0 : i64, tpu.core_type = #tpu.core_type<tc>, window_params = [{transform_indices = @transform_0, window_bounds = array<i64: 16, 128>}, {pipeline_mode = #tpu.pipeline_mode<synchronous>, transform_indices = @transform_1, window_bounds = array<i64: 24, 16>}, {pipeline_mode = #tpu.pipeline_mode<synchronous>, transform_indices = @transform_2, window_bounds = array<i64: 24, 1>}, {pipeline_mode = #tpu.pipeline_mode<synchronous>, transform_indices = @transform_3, window_bounds = array<i64: 32, 24>}, {pipeline_mode = #tpu.pipeline_mode<synchronous>, transform_indices = @transform_4, window_bounds = array<i64: 32, 1>}, {pipeline_mode = #tpu.pipeline_mode<synchronous>, transform_indices = @transform_5, window_bounds = array<i64: 8, 32>}, {pipeline_mode = #tpu.pipeline_mode<synchronous>, transform_indices = @transform_6, window_bounds = array<i64: 8, 1>}, {transform_indices = @transform_7, window_bounds = array<i64: 1, 128>}]} {
    %c0 = arith.constant 0 : index
    %c0_0 = arith.constant 0 : index
    %0 = vector.load %arg1[%c0, %c0_0] : memref<16x128xbf16, #tpu.memory_space<vmem>>, vector<16x128xbf16>
    %c0_1 = arith.constant 0 : index
    %c0_2 = arith.constant 0 : index
    %1 = vector.load %arg2[%c0_1, %c0_2] : memref<24x16xbf16, #tpu.memory_space<vmem>>, vector<24x16xbf16>
    %cst = arith.constant dense<0.000000e+00> : vector<24x128xf32>
    %2 = tpu.matmul %1, %0, %cst {dimension_numbers = #tpu.dot_dimension_numbers<[1], [0], [0], [1], [0, 0, 1, 1], [], []>} : vector<24x16xbf16>, vector<16x128xbf16>, vector<24x128xf32> -> vector<24x128xf32>
    %c0_3 = arith.constant 0 : index
    %c0_4 = arith.constant 0 : index
    %3 = vector.load %arg3[%c0_3, %c0_4] : memref<24x1xf32, #tpu.memory_space<vmem>>, vector<24x1xf32>
    %4 = vector.broadcast %3 : vector<24x1xf32> to vector<24x128xf32>
    %5 = arith.addf %2, %4 : vector<24x128xf32>
    %cst_5 = arith.constant 0.000000e+00 : f32
    %6 = vector.broadcast %cst_5 : f32 to vector<24x128xf32>
    %7 = arith.maximumf %5, %6 : vector<24x128xf32>
    %c0_6 = arith.constant 0 : index
    %c0_7 = arith.constant 0 : index
    %8 = vector.load %arg4[%c0_6, %c0_7] : memref<32x24xbf16, #tpu.memory_space<vmem>>, vector<32x24xbf16>
    %9 = arith.truncf %7 : vector<24x128xf32> to vector<24x128xbf16>
    %cst_8 = arith.constant dense<0.000000e+00> : vector<32x128xf32>
    %10 = tpu.matmul %8, %9, %cst_8 {dimension_numbers = #tpu.dot_dimension_numbers<[1], [0], [0], [1], [0, 0, 1, 1], [], []>} : vector<32x24xbf16>, vector<24x128xbf16>, vector<32x128xf32> -> vector<32x128xf32>
    %c0_9 = arith.constant 0 : index
    %c0_10 = arith.constant 0 : index
    %11 = vector.load %arg5[%c0_9, %c0_10] : memref<32x1xf32, #tpu.memory_space<vmem>>, vector<32x1xf32>
    %12 = vector.broadcast %11 : vector<32x1xf32> to vector<32x128xf32>
    %13 = arith.addf %10, %12 : vector<32x128xf32>
    %cst_11 = arith.constant 0.000000e+00 : f32
    %14 = vector.broadcast %cst_11 : f32 to vector<32x128xf32>
    %15 = arith.maximumf %13, %14 : vector<32x128xf32>
    %c0_12 = arith.constant 0 : index
    %c0_13 = arith.constant 0 : index
    %16 = vector.load %arg6[%c0_12, %c0_13] : memref<8x32xbf16, #tpu.memory_space<vmem>>, vector<8x32xbf16>
    %17 = arith.truncf %15 : vector<32x128xf32> to vector<32x128xbf16>
    %cst_14 = arith.constant dense<0.000000e+00> : vector<8x128xf32>
    %18 = tpu.matmul %16, %17, %cst_14 {dimension_numbers = #tpu.dot_dimension_numbers<[1], [0], [0], [1], [0, 0, 1, 1], [], []>} : vector<8x32xbf16>, vector<32x128xbf16>, vector<8x128xf32> -> vector<8x128xf32>
    %c0_15 = arith.constant 0 : index
    %c0_16 = arith.constant 0 : index
    %19 = vector.load %arg7[%c0_15, %c0_16] : memref<8x1xf32, #tpu.memory_space<vmem>>, vector<8x1xf32>
    %20 = vector.broadcast %19 : vector<8x1xf32> to vector<8x128xf32>
    %21 = arith.addf %18, %20 : vector<8x128xf32>
    %22 = vector.extract_strided_slice %21 {offsets = [0, 0], sizes = [1, 128], strides = [1, 1]} : vector<8x128xf32> to vector<1x128xf32>
    %23 = arith.negf %22 : vector<1x128xf32>
    %24 = math.exp %23 : vector<1x128xf32>
    %cst_17 = arith.constant 1.000000e+00 : f32
    %25 = vector.broadcast %cst_17 : f32 to vector<1x128xf32>
    %26 = arith.addf %25, %24 : vector<1x128xf32>
    %27 = arith.divf %25, %26 : vector<1x128xf32>
    %c0_18 = arith.constant 0 : index
    %c0_19 = arith.constant 0 : index
    %28 = vector.load %arg8[%c0_18, %c0_19] : memref<1x128xf32, #tpu.memory_space<vmem>>, vector<1x128xf32>
    tpu.vector_store %arg8[%c0_18, %c0_19], %27 {strides = array<i32>} : memref<1x128xf32, #tpu.memory_space<vmem>>, vector<1x128xf32>,
    return
  }
  func.func @transform_0(%arg0: i32) -> (i32, i32) {
    %c0_i32 = arith.constant 0 : i32
    %c0_i32_0 = arith.constant 0 : i32
    return %c0_i32, %arg0 : i32, i32
  }
  func.func @transform_1(%arg0: i32) -> (i32, i32) {
    %c0_i32 = arith.constant 0 : i32
    %c0_i32_0 = arith.constant 0 : i32
    %c0_i32_1 = arith.constant 0 : i32
    return %c0_i32, %c0_i32_0 : i32, i32
  }
  func.func @transform_2(%arg0: i32) -> (i32, i32) {
    %c0_i32 = arith.constant 0 : i32
    %c0_i32_0 = arith.constant 0 : i32
    %c0_i32_1 = arith.constant 0 : i32
    return %c0_i32, %c0_i32_0 : i32, i32
  }
  func.func @transform_3(%arg0: i32) -> (i32, i32) {
    %c0_i32 = arith.constant 0 : i32
    %c0_i32_0 = arith.constant 0 : i32
    %c0_i32_1 = arith.constant 0 : i32
    return %c0_i32, %c0_i32_0 : i32, i32
  }
  func.func @transform_4(%arg0: i32) -> (i32, i32) {
    %c0_i32 = arith.constant 0 : i32
    %c0_i32_0 = arith.constant 0 : i32
    %c0_i32_1 = arith.constant 0 : i32
    return %c0_i32, %c0_i32_0 : i32, i32
  }
  func.func @transform_5(%arg0: i32) -> (i32, i32) {
    %c0_i32 = arith.constant 0 : i32
    %c0_i32_0 = arith.constant 0 : i32
    %c0_i32_1 = arith.constant 0 : i32
    return %c0_i32, %c0_i32_0 : i32, i32
  }
  func.func @transform_6(%arg0: i32) -> (i32, i32) {
    %c0_i32 = arith.constant 0 : i32
    %c0_i32_0 = arith.constant 0 : i32
    %c0_i32_1 = arith.constant 0 : i32
    return %c0_i32, %c0_i32_0 : i32, i32
  }
  func.func @transform_7(%arg0: i32) -> (i32, i32) {
    %c0_i32 = arith.constant 0 : i32
    %c0_i32_0 = arith.constant 0 : i32
    return %c0_i32, %arg0 : i32, i32
  }
}

</mosaic_0001>

<llo_original>
// kernel: tpu_custom_call.1
$region0: #{tpu_custom_call.1}
  #allocation0 [shape = 'u32[]', space=smem, size = 0x4, offset = 0x4, fixed_abs, tag = 'smem constant byte address 0x4 - core index']
  #allocation1 [shape = 'u32[144,128]{1,0:T(1,128)}', space=vmem, size = 0x12000, scoped, tag = 'internal scratch']
  %s0 = inlined_call_operand.vmem [shape: bf16[16,128], index: 0, kind: input, shape index: {}]
  %s1 = inlined_call_operand.vmem [shape: bf16[24,16], index: 1, kind: input, shape index: {}]
  %s2 = inlined_call_operand.vmem [shape: f32[24,1], index: 2, kind: input, shape index: {}]
  %s3 = inlined_call_operand.vmem [shape: bf16[32,24], index: 3, kind: input, shape index: {}]
  %s4 = inlined_call_operand.vmem [shape: f32[32,1], index: 4, kind: input, shape index: {}]
  %s5 = inlined_call_operand.vmem [shape: bf16[8,32], index: 5, kind: input, shape index: {}]
  %s6 = inlined_call_operand.vmem [shape: f32[8,1], index: 6, kind: input, shape index: {}]
  %s7 = inlined_call_operand.hbm [shape: f32[1,128], index: 7, kind: output, shape index: {}]
  %s8 = sld [smem:[#allocation0]]
  $region38: #{tpu_custom_call.1} parent=0
    _
  %s10 = ssub.s32 1, %s8
  %s11 = scalar_select 0, %s10, %s8
  $region1: #{tpu_custom_call.1} parent=0
    #allocation2 [shape = 'u8[512]{0}', space=vmem, size = 0x400, scoped, tag = 'output window, operand 0, single buffered']
    #allocation3 [shape = 's32[1]{0}', space=sflag, size = 0x4, scoped, tag = 'scoped memory for tpu_custom_call.1']
    %12 = vsyncpa [#allocation3], 0
    // Predicated region
    $region2: #{tpu_custom_call.1} parent=1 // pred_check
      _
    $region3: #{tpu_custom_call.1} parent=1 // pred_check_branch
      %14 = sbr.rel (0) target = $region5
    $region4: #{tpu_custom_call.1} parent=1 // pred_region
      _
    $region5: #{tpu_custom_call.1} parent=1 // pred_fallthru
      _
    // Predicated region
    $region6: #{tpu_custom_call.1} parent=1 // pred_check
      _
    $region7: #{tpu_custom_call.1} parent=1 // pred_check_branch
      %16 = sbr.rel (0) target = $region9
    $region8: #{tpu_custom_call.1} parent=1 // pred_region
      _
    $region9: #{tpu_custom_call.1} parent=1 // pred_fallthru
      _
    // Predicated region
    $region10: #{tpu_custom_call.1} parent=1 // pred_check
      _
    $region11: #{tpu_custom_call.1} parent=1 // pred_check_branch
      %18 = sbr.rel (0) target = $region13
    $region12: #{tpu_custom_call.1} parent=1 // pred_region
      _
    $region13: #{tpu_custom_call.1} parent=1 // pred_fallthru
      _
    // Predicated region
    $region14: #{tpu_custom_call.1} parent=1 // pred_check
      _
    $region15: #{tpu_custom_call.1} parent=1 // pred_check_branch
      %20 = sbr.rel (0) target = $region17
    $region16: #{tpu_custom_call.1} parent=1 // pred_region
      _
    $region17: #{tpu_custom_call.1} parent=1 // pred_fallthru
      _
    // Predicated region
    $region18: #{tpu_custom_call.1} parent=1 // pred_check
      _
    $region19: #{tpu_custom_call.1} parent=1 // pred_check_branch
      %22 = sbr.rel (0) target = $region21
    $region20: #{tpu_custom_call.1} parent=1 // pred_region
      _
    $region21: #{tpu_custom_call.1} parent=1 // pred_fallthru
      _
    // Predicated region
    $region22: #{tpu_custom_call.1} parent=1 // pred_check
      _
    $region23: #{tpu_custom_call.1} parent=1 // pred_check_branch
      %24 = sbr.rel (0) target = $region25
    $region24: #{tpu_custom_call.1} parent=1 // pred_region
      _
    $region25: #{tpu_custom_call.1} parent=1 // pred_fallthru
      _
    // Predicated region
    $region26: #{tpu_custom_call.1} parent=1 // pred_check
      _
    $region27: #{tpu_custom_call.1} parent=1 // pred_check_branch
      %26 = sbr.rel (0) target = $region29
    $region28: #{tpu_custom_call.1} parent=1 // pred_region
      _
    $region29: #{tpu_custom_call.1} parent=1 // pred_fallthru
      _
    %v28 = vld [vmem:[%s0] sm:$0xf]
    %v29 = vld [vmem:[%s0 + $0x4] sm:$0xf]
    %v30 = vld [vmem:[%s1] sm:$0xf]
    %v31 = vld [vmem:[%s1 + $0x4] sm:$0xf]
    %v32 = vld [vmem:[%s1 + $0x8] sm:$0xf]
    %v33 = vld [vmem:[%s2] sm:$0xff]
    %v34 = vld [vmem:[%s2 + $0x8] sm:$0xff]
    %v35 = vld [vmem:[%s2 + $0x10] sm:$0xff]
    %37 = vset.pattern.permute.xlu0 0
    %38 = vperm.xlu0 %37, %v33
    %v39 = vpop.permute.xlu0 %38
    %42 = vset.pattern.permute.xlu0 0
    %43 = vperm.xlu0 %42, %v34
    %v44 = vpop.permute.xlu0 %43
    %47 = vset.pattern.permute.xlu0 0
    %48 = vperm.xlu0 %47, %v35
    %v49 = vpop.permute.xlu0 %48
    %v54 = vunpack.c.l.b16 %v30
    %v55 = vunpack.c.l.b16 %v31
    %v56 = vunpack.c.l.b16 %v32
    %v57 = vpack.c.b16 %v55, %v54
    %v58 = vpack.c.b16 %v56, %v56
    %v61 = vunpack.c.l.b16 %v28
    %v62 = vunpack.c.l.b16 %v29
    %v63 = vpack.c.b16 %v62, %v61
    %vm65 = vcmask 130048
    %v67 = vsel %vm65, %v57, 0
    %v70 = vsel %vm65, %v58, 0
    %72 = vmatprep.subr.bf16.mxu0 0
    %73 = vmatpush1.bf16.msra.mxu0 0
    %74 = vmatprep.subr.bf16.mxu0 0
    %75 = vmatpush1.bf16.msra.mxu0 0
    %76 = vmatprep.subr.bf16.mxu0 0
    %77 = vmatpush1.bf16.msra.mxu0 0
    %78 = vmatprep.subr.bf16.mxu0 0
    %79 = vmatpush1.bf16.msra.mxu0 0
    %80 = vmatprep.subr.bf16.mxu0 0
    %81 = vmatpush1.bf16.msra.mxu0 0
    %82 = vmatprep.subr.bf16.mxu0 0
    %83 = vmatpush1.bf16.msra.mxu0 0
    %84 = vmatprep.subr.bf16.mxu0 0
    %85 = vmatpush1.bf16.msra.mxu0 0
    %86 = vmatprep.subr.bf16.mxu0 0
    %87 = vmatpush1.bf16.msra.mxu0 %v63
    %88 = vmatprep.subr.bf16.mxu0 0
    %89 = vmatpush2.bf16.msra.mxu0 0
    %90 = vmatprep.subr.bf16.mxu0 0
    %91 = vmatpush2.bf16.msra.mxu0 0
    %92 = vmatprep.subr.bf16.mxu0 0
    %93 = vmatpush2.bf16.msra.mxu0 0
    %94 = vmatprep.subr.bf16.mxu0 0
    %95 = vmatpush2.bf16.msra.mxu0 0
    %96 = vmatprep.subr.bf16.mxu0 0
    %97 = vmatpush2.bf16.msra.mxu0 0
    %98 = vmatprep.subr.bf16.mxu0 0
    %99 = vmatpush2.bf16.msra.mxu0 0
    %100 = vmatprep.subr.bf16.mxu0 0
    %101 = vmatpush2.bf16.msra.mxu0 0
    %102 = vmatprep.subr.bf16.mxu0 0
    %103 = vmatpush2.bf16.msra.mxu0 0
    %104 = vmatprep.mubr.bf16.mxu0 0
    %105 = vmatmul.mubr.bf16.gmra.mxu0 %v67
    %v106 = vpop.f32.mrf.mxu0
    %v107 = vadd.f32 %v39, %v106
    %v108 = vpop.f32.mrf.mxu0
    %v109 = vpop.f32.mrf.mxu0
    %v110 = vadd.f32 %v44, %v109
    %v111 = vpop.f32.mrf.mxu0
    %112 = vmatprep.mubr.bf16.mxu0 0
    %113 = vmatmul.mubr.bf16.gmra.mxu0 %v70
    %v114 = vpop.f32.mrf.mxu0
    %v115 = vadd.f32 %v49, %v114
    %v116 = vpop.f32.mrf.mxu0
    %v117 = vpop.f32.mrf.mxu0
    %v118 = vpop.f32.mrf.mxu0
    %119 = vdwg.mxu0
    %v120 = vmax.f32 %v107, 0.0
    %v121 = vmax.f32 %v110, 0.0
    %v122 = vmax.f32 %v115, 0.0
    %v123 = vld [vmem:[%s3] sm:$0xf]
    %v124 = vld [vmem:[%s3 + $0x4] sm:$0xf]
    %v125 = vld [vmem:[%s3 + $0x8] sm:$0xf]
    %v126 = vld [vmem:[%s3 + $0xc] sm:$0xf]
    %v127 = vpack.c.bf16 %v121, %v120
    %v128 = vpack.c.bf16 %v122, %v122
    %v129 = vld [vmem:[%s4] sm:$0xff]
    %v130 = vld [vmem:[%s4 + $0x8] sm:$0xff]
    %v131 = vld [vmem:[%s4 + $0x10] sm:$0xff]
    %v132 = vld [vmem:[%s4 + $0x18] sm:$0xff]
    %134 = vset.pattern.permute.xlu0 0
    %135 = vperm.xlu0 %134, %v129
    %v136 = vpop.permute.xlu0 %135
    %139 = vset.pattern.permute.xlu0 0
    %140 = vperm.xlu0 %139, %v130
    %v141 = vpop.permute.xlu0 %140
    %144 = vset.pattern.permute.xlu0 0
    %145 = vperm.xlu0 %144, %v131
    %v146 = vpop.permute.xlu0 %145
    %149 = vset.pattern.permute.xlu0 0
    %150 = vperm.xlu0 %149, %v132
    %v151 = vpop.permute.xlu0 %150
    %v157 = vunpack.c.l.b16 %v123
    %v158 = vunpack.c.l.b16 %v124
    %v159 = vunpack.c.l.b16 %v125
    %v160 = vunpack.c.l.b16 %v126
    %v161 = vpack.c.b16 %v158, %v157
    %v162 = vpack.c.b16 %v160, %v159
    %vm163 = vcmask 195584
    %v165 = vsel %vm163, %v161, 0
    %v168 = vsel %vm163, %v162, 0
    %vm170 = vcmask 1043456
    %v172 = vsel %vm170, %v128, 0
    %174 = vmatprep.subr.bf16.mxu0 0
    %175 = vmatpush1.bf16.msra.mxu0 0
    %176 = vmatprep.subr.bf16.mxu0 0
    %177 = vmatpush1.bf16.msra.mxu0 0
    %178 = vmatprep.subr.bf16.mxu0 0
    %179 = vmatpush1.bf16.msra.mxu0 0
    %180 = vmatprep.subr.bf16.mxu0 0
    %181 = vmatpush1.bf16.msra.mxu0 0
    %182 = vmatprep.subr.bf16.mxu0 0
    %183 = vmatpush1.bf16.msra.mxu0 0
    %184 = vmatprep.subr.bf16.mxu0 0
    %185 = vmatpush1.bf16.msra.mxu0 0
    %186 = vmatprep.subr.bf16.mxu0 0
    %187 = vmatpush1.bf16.msra.mxu0 %v172
    %188 = vmatprep.subr.bf16.mxu0 0
    %189 = vmatpush1.bf16.msra.mxu0 %v127
    %190 = vmatprep.subr.bf16.mxu0 0
    %191 = vmatpush2.bf16.msra.mxu0 0
    %192 = vmatprep.subr.bf16.mxu0 0
    %193 = vmatpush2.bf16.msra.mxu0 0
    %194 = vmatprep.subr.bf16.mxu0 0
    %195 = vmatpush2.bf16.msra.mxu0 0
    %196 = vmatprep.subr.bf16.mxu0 0
    %197 = vmatpush2.bf16.msra.mxu0 0
    %198 = vmatprep.subr.bf16.mxu0 0
    %199 = vmatpush2.bf16.msra.mxu0 0
    %200 = vmatprep.subr.bf16.mxu0 0
    %201 = vmatpush2.bf16.msra.mxu0 0
    %202 = vmatprep.subr.bf16.mxu0 0
    %203 = vmatpush2.bf16.msra.mxu0 0
    %204 = vmatprep.subr.bf16.mxu0 0
    %205 = vmatpush2.bf16.msra.mxu0 0
    %206 = vmatprep.mubr.bf16.mxu0 0
    %207 = vmatmul.mubr.bf16.gmra.mxu0 %v165
    %v208 = vpop.f32.mrf.mxu0
    %v209 = vadd.f32 %v136, %v208
    %v210 = vpop.f32.mrf.mxu0
    %v211 = vpop.f32.mrf.mxu0
    %v212 = vadd.f32 %v141, %v211
    %v213 = vpop.f32.mrf.mxu0
    %214 = vmatprep.mubr.bf16.mxu0 0
    %215 = vmatmul.mubr.bf16.gmra.mxu0 %v168
    %v216 = vpop.f32.mrf.mxu0
    %v217 = vadd.f32 %v146, %v216
    %v218 = vpop.f32.mrf.mxu0
    %v219 = vpop.f32.mrf.mxu0
    %v220 = vadd.f32 %v151, %v219
    %v221 = vpop.f32.mrf.mxu0
    %222 = vdwg.mxu0
    %v223 = vmax.f32 %v209, 0.0
    %v224 = vmax.f32 %v212, 0.0
    %v225 = vmax.f32 %v217, 0.0
    %v226 = vmax.f32 %v220, 0.0
    %v227 = vld [vmem:[%s5] sm:$0xf]
    %v228 = vpack.c.bf16 %v224, %v223
    %v229 = vpack.c.bf16 %v226, %v225
    %v230 = vld [vmem:[%s6] sm:$0xff]
    %232 = vset.pattern.permute.xlu0 0
    %233 = vperm.xlu0 %232, %v230
    %v234 = vpop.permute.xlu0 %233
    %vm236 = vcmask 261120
    %v238 = vsel %vm236, %v227, 0
    %240 = vmatprep.subr.bf16.mxu0 0
    %241 = vmatpush1.bf16.msra.mxu0 0
    %242 = vmatprep.subr.bf16.mxu0 0
    %243 = vmatpush1.bf16.msra.mxu0 0
    %244 = vmatprep.subr.bf16.mxu0 0
    %245 = vmatpush1.bf16.msra.mxu0 0
    %246 = vmatprep.subr.bf16.mxu0 0
    %247 = vmatpush1.bf16.msra.mxu0 0
    %248 = vmatprep.subr.bf16.mxu0 0
    %249 = vmatpush1.bf16.msra.mxu0 0
    %250 = vmatprep.subr.bf16.mxu0 0
    %251 = vmatpush1.bf16.msra.mxu0 0
    %252 = vmatprep.subr.bf16.mxu0 0
    %253 = vmatpush1.bf16.msra.mxu0 %v229
    %254 = vmatprep.subr.bf16.mxu0 0
    %255 = vmatpush1.bf16.msra.mxu0 %v228
    %256 = vmatprep.subr.bf16.mxu0 0
    %257 = vmatpush2.bf16.msra.mxu0 0
    %258 = vmatprep.subr.bf16.mxu0 0
    %259 = vmatpush2.bf16.msra.mxu0 0
    %260 = vmatprep.subr.bf16.mxu0 0
    %261 = vmatpush2.bf16.msra.mxu0 0
    %262 = vmatprep.subr.bf16.mxu0 0
    %263 = vmatpush2.bf16.msra.mxu0 0
    %264 = vmatprep.subr.bf16.mxu0 0
    %265 = vmatpush2.bf16.msra.mxu0 0
    %266 = vmatprep.subr.bf16.mxu0 0
    %267 = vmatpush2.bf16.msra.mxu0 0
    %268 = vmatprep.subr.bf16.mxu0 0
    %269 = vmatpush2.bf16.msra.mxu0 0
    %270 = vmatprep.subr.bf16.mxu0 0
    %271 = vmatpush2.bf16.msra.mxu0 0
    %272 = vmatprep.mubr.bf16.mxu0 0
    %273 = vmatmul.mubr.bf16.gmra.mxu0 %v238
    %v274 = vpop.f32.mrf.mxu0
    %v275 = vadd.f32 %v234, %v274
    %v276 = vpop.f32.mrf.mxu0
    %v277 = vpop.f32.mrf.mxu0
    %v278 = vpop.f32.mrf.mxu0
    %279 = vdwg.mxu0
    %v280 = vxor.u32 %v275, 2147483648
    %v281 = vmul.f32 %v280, 1.442695
    %v282 = vpow.pop %v281
    %v283 = vadd.f32 %v282, 1.0
    %v284 = vrcp.pop %v283
    %v285 = vmul.f32 1.0, %v284
    %286 = vst [vmem:[#allocation2] sm:$0x1] %v285
    // Predicated region
    $region30: #{tpu_custom_call.1} parent=1 // pred_check
      _
    $region31: #{tpu_custom_call.1} parent=1 // pred_check_branch
      %288 = sbr.rel (0) target = $region33
    $region32: #{tpu_custom_call.1} parent=1 // pred_region
      %s290 = ssub.s32 16, 16
      %291 = vsyncadd [#allocation3], %s290
      %s293 = sshll.u32 [#allocation2], 4
      %s294 = int_to_ptr.vmem [resolvable:$true] %s293
      %296 = dma.vmem_to_hbm [thread:$0]  %s294, 16, %s7, [#allocation3]
    $region33: #{tpu_custom_call.1} parent=1 // pred_fallthru
      _
    // Predicated region
    $region34: #{tpu_custom_call.1} parent=1 // pred_check
      _
    $region35: #{tpu_custom_call.1} parent=1 // pred_check_branch
      %298 = sbr.rel (0) target = $region37
    $region36: #{tpu_custom_call.1} parent=1 // pred_region
      %299 = dma.done [#allocation3], 16
    $region37: #{tpu_custom_call.1} parent=1 // pred_fallthru
      _
    %300 = vsyncpa [#allocation3], 1

</llo_original>
